<compile_context>
chip_gen: v7x
topology: tpu7x:2x2x1
jax: 0.10.0
libtpu: 0.0.40
codegen_flags: <defaults>
</compile_context>

<pallas_src>
import functools

import jax
import jax.numpy as jnp
from jax.experimental import pallas as pl
from jax.experimental.pallas import tpu as pltpu

EPS = 1e-5


# ----------------------------------------------------------------------------
# generation detection / budgets
# ----------------------------------------------------------------------------
def _tpu_kind():
    try:
        return jax.devices()[0].device_kind.lower()
    except Exception:
        return ""


_KIND = _tpu_kind()
_IS_V5 = "v5" in _KIND
_IS_V7 = "v7" in _KIND
# v7x has 64 MiB physical VMEM per TC; v5e/v6e have 128 MiB.
VMEM_LIMIT = (40 << 20) if _IS_V7 else (64 << 20)
BLOCK_BUDGET = VMEM_LIMIT - (16 << 20)


# ----------------------------------------------------------------------------
# helpers
# ----------------------------------------------------------------------------
def _full_spec(shape):
    n = len(shape)
    return pl.BlockSpec(shape, lambda *_: (0,) * n)


def _divisors(m):
    ds = set()
    d = 1
    while d * d <= m:
        if m % d == 0:
            ds.add(d)
            ds.add(m // d)
        d += 1
    return sorted(ds)


def _pick_rows(m, row_bytes, fixed_bytes=0, budget=None):
    """Largest divisor of m whose double-buffered row blocks (plus resident,
    also double-buffered, weights) stay under the VMEM budget; prefers
    sublane-aligned (x8) rows and >=4 grid steps (then >=2)."""
    if budget is None:
        budget = BLOCK_BUDGET
    avail = max(budget - 2 * fixed_bytes, 2 << 20)
    divs = _divisors(m)
    ok = [d for d in divs if 2 * d * row_bytes <= avail] or [1]
    aligned = [d for d in ok if d % 8 == 0] or ok
    for want in (4, 2):                       # v7x: >=2 steps per TensorCore
        multi = [d for d in aligned if m // d >= want]
        if multi and max(multi) * 8 >= max(aligned):
            return max(multi)
    return max(aligned)


def _block_diag(blk, reps):
    """Block-diagonal matrix: reps copies of blk ((a,b) -> (reps*a, reps*b))."""
    a, b = blk.shape
    return jnp.einsum("wv,cd->wcvd", jnp.eye(reps, dtype=blk.dtype), blk).reshape(
        reps * a, reps * b)


def _bn_scale_shift(mean, var, gamma, beta):
    scale = gamma / jnp.sqrt(var + EPS)
    shift = beta - mean * scale
    return scale.astype(jnp.float32), shift.astype(jnp.float32)


def _fold_lane_stats(st, group, cout, cnt):
    """st: (grid, 2, lanes) raw per-lane [sum, sumsq] -> per-channel mean/var."""
    sums = st.sum(0)                                    # (2, lanes)
    mean = sums[0].reshape(group, cout).sum(0) / cnt
    ex2 = sums[1].reshape(group, cout).sum(0) / cnt
    var = jnp.maximum(ex2 - mean * mean, 0.0)
    return mean, var


# ----------------------------------------------------------------------------
# kernel A: (bn1 folded) conv1(1x1) + sigmoid + ConvTranspose2d(2x2, s=2)
# with a single merged upsample weight (lane-dense (rows, 2L) output) and
# lane-dense partial BN2 stats of both y and x_high.
# ----------------------------------------------------------------------------
def _kernel_a(x_ref, xh_ref, w1_ref, b1_ref, wt_ref, bt_ref,
              y_ref, sty_ref, stx_ref):
    x = x_ref[...]                                              # (R, W*Cin)
    s = jax.nn.sigmoid(
        jnp.dot(x, w1_ref[...], preferred_element_type=jnp.float32) + b1_ref[...])
    y = jnp.dot(s, wt_ref[...], preferred_element_type=jnp.float32) + bt_ref[...]
    y_ref[...] = y                                              # (R, 2L) unmasked store
    sty_ref[0, 0:1, :] = jnp.sum(y, axis=0, keepdims=True)
    sty_ref[0, 1:2, :] = jnp.sum(y * y, axis=0, keepdims=True)
    xh = xh_ref[...]                                            # (2R, L), stats only
    stx_ref[0, 0:1, :] = jnp.sum(xh, axis=0, keepdims=True)
    stx_ref[0, 1:2, :] = jnp.sum(xh * xh, axis=0, keepdims=True)


def low_stage(xl2d, xh_slab, w1big, b1w, wtbig, btw2):
    ma, win = xl2d.shape
    lane = xh_slab.shape[1]                    # L
    lane2 = wtbig.shape[1]                     # 2L
    fixed = 4 * (w1big.size + b1w.size + wtbig.size + btw2.size)
    row_bytes = 4 * (win + 2 * lane + lane2)   # xl row + 2 xh rows + y row
    rows = _pick_rows(ma, row_bytes, fixed)
    grid = (ma // rows,)
    return pl.pallas_call(
        _kernel_a,
        out_shape=(jax.ShapeDtypeStruct((ma, lane2), jnp.float32),
                   jax.ShapeDtypeStruct((grid[0], 2, lane2), jnp.float32),
                   jax.ShapeDtypeStruct((grid[0], 2, lane), jnp.float32)),
        grid=grid,
        in_specs=[
            pl.BlockSpec((rows, win), lambda i: (i, 0)),
            pl.BlockSpec((2 * rows, lane), lambda i: (i, 0)),
            _full_spec(w1big.shape), _full_spec(b1w.shape),
            _full_spec(wtbig.shape), _full_spec(btw2.shape),
        ],
        out_specs=(pl.BlockSpec((rows, lane2), lambda i: (i, 0)),
                   pl.BlockSpec((1, 2, lane2), lambda i: (i, 0, 0)),
                   pl.BlockSpec((1, 2, lane), lambda i: (i, 0, 0))),
        compiler_params=pltpu.CompilerParams(
            dimension_semantics=("parallel",), vmem_limit_bytes=VMEM_LIMIT),
    )(xl2d, xh_slab, w1big, b1w, wtbig, btw2)


# ----------------------------------------------------------------------------
# kernel B: channel-concat + (bn2 folded) conv2(1x1) + lane-dense BN3 stats.
# fuse_k=True (v6e/v7x): single K=2L contraction; False (v5e): two K=L dots.
# ----------------------------------------------------------------------------
def _kernel_b(y_ref, xh_ref, w2_ref, b2_ref, z_ref, st_ref, *, fuse_k):
    y = y_ref[...]
    xh = xh_ref[...]
    w2 = w2_ref[...]                                            # (2L, L)
    if fuse_k:
        cat = jnp.concatenate([y, xh], axis=1)                  # (R, 2L)
        z = jnp.dot(cat, w2, preferred_element_type=jnp.float32)
    else:
        lane = y.shape[1]
        z = (jnp.dot(y, w2[:lane, :], preferred_element_type=jnp.float32)
             + jnp.dot(xh, w2[lane:, :], preferred_element_type=jnp.float32))
    z = z + b2_ref[...]
    z_ref[...] = z
    st_ref[0, 0:1, :] = jnp.sum(z, axis=0, keepdims=True)
    st_ref[0, 1:2, :] = jnp.sum(z * z, axis=0, keepdims=True)


def mid_stage(y_slab, xh_slab, w2big, b2w, fuse_k):
    mb, lane = y_slab.shape
    fixed = 4 * (w2big.size + b2w.size)
    row_bytes = 4 * 3 * lane                   # y + xh in, z out
    rows = _pick_rows(mb, row_bytes, fixed)
    grid = (mb // rows,)
    kern = functools.partial(_kernel_b, fuse_k=fuse_k)
    return pl.pallas_call(
        kern,
        out_shape=(jax.ShapeDtypeStruct((mb, lane), jnp.float32),
                   jax.ShapeDtypeStruct((grid[0], 2, lane), jnp.float32)),
        grid=grid,
        in_specs=[
            pl.BlockSpec((rows, lane), lambda i: (i, 0)),
            pl.BlockSpec((rows, lane), lambda i: (i, 0)),
            _full_spec(w2big.shape), _full_spec(b2w.shape),
        ],
        out_specs=(pl.BlockSpec((rows, lane), lambda i: (i, 0)),
                   pl.BlockSpec((1, 2, lane), lambda i: (i, 0, 0))),
        compiler_params=pltpu.CompilerParams(
            dimension_semantics=("parallel",), vmem_limit_bytes=VMEM_LIMIT),
    )(y_slab, xh_slab, w2big, b2w)


# ----------------------------------------------------------------------------
# kernel C: (bn3 folded) conv3(3x3, valid) as 3 banded matmuls (one per ky),
# output lane-padded to a multiple of 128 so stores are unmasked.
# ----------------------------------------------------------------------------
def _kernel_c(z_ref, w3_ref, b3_ref, o_ref, *, hout):
    x = z_ref[0]                                               # (Hin, L)
    acc = jnp.dot(x[0:hout, :], w3_ref[0], preferred_element_type=jnp.float32)
    acc = acc + jnp.dot(x[1:hout + 1, :], w3_ref[1], preferred_element_type=jnp.float32)
    acc = acc + jnp.dot(x[2:hout + 2, :], w3_ref[2], preferred_element_type=jnp.float32)
    o_ref[0] = acc + b3_ref[...]


def conv3_stage(z3, w3band, b3w, hout):
    n, hin, lane = z3.shape
    lpad = w3band.shape[-1]
    kern = functools.partial(_kernel_c, hout=hout)
    # TODO(synk): tile output rows with a 2-row halo + sub-row bands for large W (v7x VMEM).
    return pl.pallas_call(
        kern,
        out_shape=jax.ShapeDtypeStruct((n, hout, lpad), jnp.float32),
        grid=(n,),
        in_specs=[
            pl.BlockSpec((1, hin, lane), lambda i: (i, 0, 0)),
            _full_spec(w3band.shape), _full_spec(b3w.shape),
        ],
        out_specs=pl.BlockSpec((1, hout, lpad), lambda i: (i, 0, 0)),
        compiler_params=pltpu.CompilerParams(
            dimension_semantics=("parallel",), vmem_limit_bytes=VMEM_LIMIT),
    )(z3, w3band, b3w)


# ----------------------------------------------------------------------------
# full forward (NCHW in / NCHW out, training-mode BatchNorm with batch stats)
# ----------------------------------------------------------------------------
def msfu_forward(p, x_low_nchw, x_high_nchw):
    xl = jnp.transpose(x_low_nchw, (0, 2, 3, 1)).astype(jnp.float32)   # (N,H,W,Cin)
    xh = jnp.transpose(x_high_nchw, (0, 2, 3, 1)).astype(jnp.float32)  # (N,2H,2W,Co)
    N, H, W, Cin = xl.shape
    Cout = p["w1"].shape[1]
    H2, W2 = 2 * H, 2 * W
    L = W2 * Cout                                  # lane width of the y/z slabs
    cnt = float(N * H2 * W2)

    # ---- stage A: bn1 + conv1(1x1) + sigmoid + ConvTranspose2d(2x2, s=2) ----
    sc1, sh1 = _bn_scale_shift(xl.mean((0, 1, 2)), xl.var((0, 1, 2)),
                               p["g1"], p["b1bn"])
    w1f = sc1[:, None] * p["w1"]                   # bn1 folded into conv1
    b1f = p["b1"] + sh1 @ p["w1"]
    w1big = _block_diag(w1f, W)                    # (W*Cin, W*Cout)
    b1w = jnp.tile(b1f, W)[None, :]                # (1, W*Cout)
    # ConvTranspose weight (ci, co, a, b); per output-row parity a: (ci -> b*Cout+co),
    # merged along lanes: ycat[:, 0:L] = rows 2h, ycat[:, L:2L] = rows 2h+1.
    wt0 = _block_diag(
        jnp.transpose(p["wt"][:, :, 0, :], (0, 2, 1)).reshape(Cout, 2 * Cout), W)
    wt1 = _block_diag(
        jnp.transpose(p["wt"][:, :, 1, :], (0, 2, 1)).reshape(Cout, 2 * Cout), W)
    wtbig = jnp.concatenate([wt0, wt1], axis=1)    # (W*Cout, 2L)
    btw2 = jnp.tile(p["bt"], 2 * W2)[None, :]      # (1, 2L)

    xl2d = xl.reshape(N * H, W * Cin)
    xh_slab = xh.reshape(N * H2, L)
    ycat, st_y, st_xh = low_stage(xl2d, xh_slab, w1big, b1w, wtbig, btw2)
    y_slab = ycat.reshape(N * H2, L)               # free: same row-major memory as NHWC y

    # ---- stage B: cat + bn2 + conv2(1x1) ----
    y_mean, y_var = _fold_lane_stats(st_y, 2 * W2, Cout, cnt)
    xh_mean, xh_var = _fold_lane_stats(st_xh, W2, Cout, cnt)
    sc2a, sh2a = _bn_scale_shift(y_mean, y_var, p["g2"][:Cout], p["b2bn"][:Cout])
    sc2b, sh2b = _bn_scale_shift(xh_mean, xh_var, p["g2"][Cout:], p["b2bn"][Cout:])
    w2a, w2b = p["w2"][:Cout], p["w2"][Cout:]
    w2big = jnp.concatenate([_block_diag(sc2a[:, None] * w2a, W2),
                             _block_diag(sc2b[:, None] * w2b, W2)], axis=0)  # (2L, L)
    b2f = p["b2"] + sh2a @ w2a + sh2b @ w2b
    b2w = jnp.tile(b2f, W2)[None, :]

    z_slab, st_z = mid_stage(y_slab, xh_slab, w2big, b2w, fuse_k=not _IS_V5)

    # ---- stage C: bn3 + conv3(3x3, valid) ----
    z_mean, z_var = _fold_lane_stats(st_z, W2, Cout, cnt)
    sc3, sh3 = _bn_scale_shift(z_mean, z_var, p["g3"], p["b3bn"])
    Hout, Wout = H2 - 2, W2 - 2
    lout = Wout * Cout
    lpad = ((lout + 127) // 128) * 128             # lane-dense padded output width
    w3f = sc3[None, None, :, None] * p["w3"]       # (3,3,C,Cout), bn3 scale folded
    bands = []
    for ky in range(3):
        b_ky = jnp.zeros((L, lout), jnp.float32)
        for kx in range(3):
            shift = jnp.eye(W2, Wout, k=-kx, dtype=jnp.float32)
            b_ky = b_ky + jnp.einsum("wv,cd->wcvd", shift, w3f[ky, kx]).reshape(L, lout)
        bands.append(jnp.pad(b_ky, ((0, 0), (0, lpad - lout))))
    w3band = jnp.stack(bands)                      # (3, L, lpad)
    b3f = p["b3c"] + sh3 @ p["w3"].sum((0, 1))
    b3w = jnp.pad(jnp.tile(b3f, Wout), (0, lpad - lout))[None, :]

    z3 = z_slab.reshape(N, H2, L)
    outp = conv3_stage(z3, w3band, b3w, Hout)      # (N, Hout, lpad)
    out = outp[:, :, :lout].reshape(N, Hout, Wout, Cout)
    return jnp.transpose(out, (0, 3, 1, 2))        # back to NCHW


# ----------------------------------------------------------------------------
# pure-JAX reference (for correctness check against the Pallas path)
# ----------------------------------------------------------------------------
def msfu_reference(p, x_low_nchw, x_high_nchw):
    xl = jnp.transpose(x_low_nchw, (0, 2, 3, 1)).astype(jnp.float32)
    xh = jnp.transpose(x_high_nchw, (0, 2, 3, 1)).astype(jnp.float32)

    def bn(x, g, b):
        m = x.mean(axis=(0, 1, 2))
        v = x.var(axis=(0, 1, 2))
        return (x - m) / jnp.sqrt(v + EPS) * g + b

    x = bn(xl, p["g1"], p["b1bn"])
    x = jnp.einsum("nhwc,cd->nhwd", x, p["w1"]) + p["b1"]
    x = jax.nn.sigmoid(x)
    N, H, W, _ = x.shape
    Co = p["wt"].shape[1]
    y = jnp.einsum("nhwc,cdab->nhawbd", x, p["wt"]).reshape(N, 2 * H, 2 * W, Co) + p["bt"]
    cat = jnp.concatenate([y, xh], axis=-1)
    x = bn(cat, p["g2"], p["b2bn"])
    x = jnp.einsum("nhwc,cd->nhwd", x, p["w2"]) + p["b2"]
    x = bn(x, p["g3"], p["b3bn"])
    Hout, Wout = 2 * H - 2, 2 * W - 2
    out = jnp.zeros((N, Hout, Wout, Co), jnp.float32)
    for ky in range(3):
        for kx in range(3):
            out = out + jnp.einsum("nhwc,cd->nhwd",
                                   x[:, ky:ky + Hout, kx:kx + Wout, :],
                                   p["w3"][ky, kx])
    out = out + p["b3c"]
    return jnp.transpose(out, (0, 3, 1, 2))


# ----------------------------------------------------------------------------
if __name__ == "__main__":
    in_filters, out_filters = 4, 8
    N, H, W = 2, 8, 8                               # x_low spatial; x_high is 2x

    key = jax.random.PRNGKey(0)
    ks = jax.random.split(key, 18)

    def nrm(k, shape, s=0.2):
        return (jax.random.normal(k, shape) * s).astype(jnp.float32)

    Cin, Cout = in_filters, out_filters
    params = dict(
        g1=1.0 + nrm(ks[0], (Cin,)),   b1bn=nrm(ks[1], (Cin,)),
        w1=nrm(ks[2], (Cin, Cout)),    b1=nrm(ks[3], (Cout,)),
        wt=nrm(ks[4], (Cout, Cout, 2, 2)),  bt=nrm(ks[5], (Cout,)),
        g2=1.0 + nrm(ks[6], (2 * Cout,)),   b2bn=nrm(ks[7], (2 * Cout,)),
        w2=nrm(ks[8], (2 * Cout, Cout)),    b2=nrm(ks[9], (Cout,)),
        g3=1.0 + nrm(ks[10], (Cout,)),      b3bn=nrm(ks[11], (Cout,)),
        w3=nrm(ks[12], (3, 3, Cout, Cout)), b3c=nrm(ks[13], (Cout,)),
    )

    x_low = jax.random.normal(ks[14], (N, Cin, H, W), jnp.float32)        # NCHW
    x_high = jax.random.normal(ks[15], (N, Cout, 2 * H, 2 * W), jnp.float32)

    out = msfu_forward(params, x_low, x_high)
    out = jax.block_until_ready(out)

    assert out.shape == (N, Cout, 2 * H - 2, 2 * W - 2), out.shape
    ref = msfu_reference(params, x_low, x_high)
    max_err = float(jnp.max(jnp.abs(out - ref)))
    assert max_err < 1e-3, f"mismatch vs reference: {max_err}"

    print("KERNEL_OK")
</pallas_src>

<mosaic_0001>
module attributes {stable_mosaic.version = 11 : i64} {
  func.func @_kernel_a(%arg0: i32, %arg1: memref<8x32xf32, #tpu.memory_space<vmem>>, %arg2: memref<16x128xf32, #tpu.memory_space<vmem>>, %arg3: memref<32x64xf32, #tpu.memory_space<vmem>>, %arg4: memref<1x64xf32, #tpu.memory_space<vmem>>, %arg5: memref<64x256xf32, #tpu.memory_space<vmem>>, %arg6: memref<1x256xf32, #tpu.memory_space<vmem>>, %arg7: memref<8x256xf32, #tpu.memory_space<vmem>>, %arg8: memref<1x2x256xf32, #tpu.memory_space<vmem>>, %arg9: memref<1x2x128xf32, #tpu.memory_space<vmem>>) attributes {dimension_semantics = [#tpu.dimension_semantics<parallel>], iteration_bounds = array<i64: 2>, scalar_prefetch = 0 : i64, scratch_operands = 0 : i64, tpu.core_type = #tpu.core_type<tc>, window_params = [{transform_indices = @transform_0, window_bounds = array<i64: 8, 32>}, {transform_indices = @transform_1, window_bounds = array<i64: 16, 128>}, {pipeline_mode = #tpu.pipeline_mode<synchronous>, transform_indices = @transform_2, window_bounds = array<i64: 32, 64>}, {pipeline_mode = #tpu.pipeline_mode<synchronous>, transform_indices = @transform_3, window_bounds = array<i64: 1, 64>}, {pipeline_mode = #tpu.pipeline_mode<synchronous>, transform_indices = @transform_4, window_bounds = array<i64: 64, 256>}, {pipeline_mode = #tpu.pipeline_mode<synchronous>, transform_indices = @transform_5, window_bounds = array<i64: 1, 256>}, {transform_indices = @transform_6, window_bounds = array<i64: 8, 256>}, {transform_indices = @transform_7, window_bounds = array<i64: 1, 2, 256>}, {transform_indices = @transform_8, window_bounds = array<i64: 1, 2, 128>}]} {
    %c0 = arith.constant 0 : index
    %c0_0 = arith.constant 0 : index
    %0 = vector.load %arg1[%c0, %c0_0] : memref<8x32xf32, #tpu.memory_space<vmem>>, vector<8x32xf32>
    %c0_1 = arith.constant 0 : index
    %c0_2 = arith.constant 0 : index
    %1 = vector.load %arg3[%c0_1, %c0_2] : memref<32x64xf32, #tpu.memory_space<vmem>>, vector<32x64xf32>
    %cst = arith.constant dense<0.000000e+00> : vector<8x64xf32>
    %2 = tpu.matmul %0, %1, %cst {dimension_numbers = #tpu.dot_dimension_numbers<[1], [0], [0], [1], [0, 0, 1, 1], [], []>} : vector<8x32xf32>, vector<32x64xf32>, vector<8x64xf32> -> vector<8x64xf32>
    %c0_3 = arith.constant 0 : index
    %c0_4 = arith.constant 0 : index
    %3 = vector.load %arg4[%c0_3, %c0_4] : memref<1x64xf32, #tpu.memory_space<vmem>>, vector<1x64xf32>
    %4 = vector.broadcast %3 : vector<1x64xf32> to vector<8x64xf32>
    %5 = arith.addf %2, %4 : vector<8x64xf32>
    %6 = arith.negf %5 : vector<8x64xf32>
    %7 = math.exp %6 : vector<8x64xf32>
    %cst_5 = arith.constant 1.000000e+00 : f32
    %8 = vector.broadcast %cst_5 : f32 to vector<8x64xf32>
    %9 = arith.addf %8, %7 : vector<8x64xf32>
    %10 = arith.divf %8, %9 : vector<8x64xf32>
    %c0_6 = arith.constant 0 : index
    %c0_7 = arith.constant 0 : index
    %11 = vector.load %arg5[%c0_6, %c0_7] : memref<64x256xf32, #tpu.memory_space<vmem>>, vector<64x256xf32>
    %cst_8 = arith.constant dense<0.000000e+00> : vector<8x256xf32>
    %12 = tpu.matmul %10, %11, %cst_8 {dimension_numbers = #tpu.dot_dimension_numbers<[1], [0], [0], [1], [0, 0, 1, 1], [], []>} : vector<8x64xf32>, vector<64x256xf32>, vector<8x256xf32> -> vector<8x256xf32>
    %c0_9 = arith.constant 0 : index
    %c0_10 = arith.constant 0 : index
    %13 = vector.load %arg6[%c0_9, %c0_10] : memref<1x256xf32, #tpu.memory_space<vmem>>, vector<1x256xf32>
    %14 = vector.broadcast %13 : vector<1x256xf32> to vector<8x256xf32>
    %15 = arith.addf %12, %14 : vector<8x256xf32>
    %c0_11 = arith.constant 0 : index
    %c0_12 = arith.constant 0 : index
    %16 = vector.load %arg7[%c0_11, %c0_12] : memref<8x256xf32, #tpu.memory_space<vmem>>, vector<8x256xf32>
    tpu.vector_store %arg7[%c0_11, %c0_12], %15 {strides = array<i32>} : memref<8x256xf32, #tpu.memory_space<vmem>>, vector<8x256xf32>,
    %cst_13 = arith.constant dense<0.000000e+00> : vector<256xf32>
    %17 = vector.multi_reduction <add>, %15, %cst_13 [0] : vector<8x256xf32> to vector<256xf32>
    %18 = vector.shape_cast %17 : vector<256xf32> to vector<1x256xf32>
    %c0_14 = arith.constant 0 : index
    %c0_15 = arith.constant 0 : index
    %c0_16 = arith.constant 0 : index
    %19 = vector.load %arg8[%c0_14, %c0_15, %c0_16] : memref<1x2x256xf32, #tpu.memory_space<vmem>>, vector<1x1x256xf32>
    %20 = vector.shape_cast %19 : vector<1x1x256xf32> to vector<1x256xf32>
    %21 = vector.shape_cast %18 : vector<1x256xf32> to vector<1x1x256xf32>
    tpu.vector_store %arg8[%c0_14, %c0_15, %c0_16], %21 {strides = array<i32>} : memref<1x2x256xf32, #tpu.memory_space<vmem>>, vector<1x1x256xf32>,
    %22 = arith.mulf %15, %15 : vector<8x256xf32>
    %cst_17 = arith.constant dense<0.000000e+00> : vector<256xf32>
    %23 = vector.multi_reduction <add>, %22, %cst_17 [0] : vector<8x256xf32> to vector<256xf32>
    %24 = vector.shape_cast %23 : vector<256xf32> to vector<1x256xf32>
    %c0_18 = arith.constant 0 : index
    %c1 = arith.constant 1 : index
    %c0_19 = arith.constant 0 : index
    %25 = vector.load %arg8[%c0_18, %c1, %c0_19] : memref<1x2x256xf32, #tpu.memory_space<vmem>>, vector<1x1x256xf32>
    %26 = vector.shape_cast %25 : vector<1x1x256xf32> to vector<1x256xf32>
    %27 = vector.shape_cast %24 : vector<1x256xf32> to vector<1x1x256xf32>
    tpu.vector_store %arg8[%c0_18, %c1, %c0_19], %27 {strides = array<i32>} : memref<1x2x256xf32, #tpu.memory_space<vmem>>, vector<1x1x256xf32>,
    %c0_20 = arith.constant 0 : index
    %c0_21 = arith.constant 0 : index
    %28 = vector.load %arg2[%c0_20, %c0_21] : memref<16x128xf32, #tpu.memory_space<vmem>>, vector<16x128xf32>
    %cst_22 = arith.constant dense<0.000000e+00> : vector<128xf32>
    %29 = vector.multi_reduction <add>, %28, %cst_22 [0] : vector<16x128xf32> to vector<128xf32>
    %30 = vector.shape_cast %29 : vector<128xf32> to vector<1x128xf32>
    %c0_23 = arith.constant 0 : index
    %c0_24 = arith.constant 0 : index
    %c0_25 = arith.constant 0 : index
    %31 = vector.load %arg9[%c0_23, %c0_24, %c0_25] : memref<1x2x128xf32, #tpu.memory_space<vmem>>, vector<1x1x128xf32>
    %32 = vector.shape_cast %31 : vector<1x1x128xf32> to vector<1x128xf32>
    %33 = vector.shape_cast %30 : vector<1x128xf32> to vector<1x1x128xf32>
    tpu.vector_store %arg9[%c0_23, %c0_24, %c0_25], %33 {strides = array<i32>} : memref<1x2x128xf32, #tpu.memory_space<vmem>>, vector<1x1x128xf32>,
    %34 = arith.mulf %28, %28 : vector<16x128xf32>
    %cst_26 = arith.constant dense<0.000000e+00> : vector<128xf32>
    %35 = vector.multi_reduction <add>, %34, %cst_26 [0] : vector<16x128xf32> to vector<128xf32>
    %36 = vector.shape_cast %35 : vector<128xf32> to vector<1x128xf32>
    %c0_27 = arith.constant 0 : index
    %c1_28 = arith.constant 1 : index
    %c0_29 = arith.constant 0 : index
    %37 = vector.load %arg9[%c0_27, %c1_28, %c0_29] : memref<1x2x128xf32, #tpu.memory_space<vmem>>, vector<1x1x128xf32>
    %38 = vector.shape_cast %37 : vector<1x1x128xf32> to vector<1x128xf32>
    %39 = vector.shape_cast %36 : vector<1x128xf32> to vector<1x1x128xf32>
    tpu.vector_store %arg9[%c0_27, %c1_28, %c0_29], %39 {strides = array<i32>} : memref<1x2x128xf32, #tpu.memory_space<vmem>>, vector<1x1x128xf32>,
    return
  }
  func.func @transform_0(%arg0: i32) -> (i32, i32) {
    %c0_i32 = arith.constant 0 : i32
    %c0_i32_0 = arith.constant 0 : i32
    return %arg0, %c0_i32 : i32, i32
  }
  func.func @transform_1(%arg0: i32) -> (i32, i32) {
    %c0_i32 = arith.constant 0 : i32
    %c0_i32_0 = arith.constant 0 : i32
    return %arg0, %c0_i32 : i32, i32
  }
  func.func @transform_2(%arg0: i32) -> (i32, i32) {
    %c0_i32 = arith.constant 0 : i32
    %c0_i32_0 = arith.constant 0 : i32
    %c0_i32_1 = arith.constant 0 : i32
    return %c0_i32, %c0_i32_0 : i32, i32
  }
  func.func @transform_3(%arg0: i32) -> (i32, i32) {
    %c0_i32 = arith.constant 0 : i32
    %c0_i32_0 = arith.constant 0 : i32
    %c0_i32_1 = arith.constant 0 : i32
    return %c0_i32, %c0_i32_0 : i32, i32
  }
  func.func @transform_4(%arg0: i32) -> (i32, i32) {
    %c0_i32 = arith.constant 0 : i32
    %c0_i32_0 = arith.constant 0 : i32
    %c0_i32_1 = arith.constant 0 : i32
    return %c0_i32, %c0_i32_0 : i32, i32
  }
  func.func @transform_5(%arg0: i32) -> (i32, i32) {
    %c0_i32 = arith.constant 0 : i32
    %c0_i32_0 = arith.constant 0 : i32
    %c0_i32_1 = arith.constant 0 : i32
    return %c0_i32, %c0_i32_0 : i32, i32
  }
  func.func @transform_6(%arg0: i32) -> (i32, i32) {
    %c0_i32 = arith.constant 0 : i32
    %c0_i32_0 = arith.constant 0 : i32
    return %arg0, %c0_i32 : i32, i32
  }
  func.func @transform_7(%arg0: i32) -> (i32, i32, i32) {
    %c0_i32 = arith.constant 0 : i32
    %c0_i32_0 = arith.constant 0 : i32
    %c0_i32_1 = arith.constant 0 : i32
    return %arg0, %c0_i32, %c0_i32_0 : i32, i32, i32
  }
  func.func @transform_8(%arg0: i32) -> (i32, i32, i32) {
    %c0_i32 = arith.constant 0 : i32
    %c0_i32_0 = arith.constant 0 : i32
    %c0_i32_1 = arith.constant 0 : i32
    return %arg0, %c0_i32, %c0_i32_0 : i32, i32, i32
  }
}

</mosaic_0001>

<llo_original>
// kernel: tpu_custom_call.1
$region0: #{tpu_custom_call.1}
  #allocation0 [shape = 'u32[]', space=smem, size = 0x4, offset = 0x4, fixed_abs, tag = 'smem constant byte address 0x4 - core index']
  #allocation1 [shape = 'u32[144,128]{1,0:T(1,128)}', space=vmem, size = 0x12000, scoped, tag = 'internal scratch']
  %s0 = inlined_call_operand.hbm [shape: f32[16,32], index: 0, kind: input, shape index: {}]
  %s1 = inlined_call_operand.hbm [shape: f32[32,128], index: 1, kind: input, shape index: {}]
  %s2 = inlined_call_operand.hbm [shape: f32[32,64], index: 2, kind: input, shape index: {}]
  %s3 = inlined_call_operand.hbm [shape: f32[1,64], index: 3, kind: input, shape index: {}]
  %s4 = inlined_call_operand.hbm [shape: f32[64,256], index: 4, kind: input, shape index: {}]
  %s5 = inlined_call_operand.hbm [shape: f32[1,256], index: 5, kind: input, shape index: {}]
  %s6 = inlined_call_operand.hbm [shape: f32[16,256], index: 6, kind: output, shape index: {0}]
  %s7 = inlined_call_operand.hbm [shape: f32[2,2,256], index: 7, kind: output, shape index: {1}]
  %s8 = inlined_call_operand.hbm [shape: f32[2,2,128], index: 8, kind: output, shape index: {2}]
  %9 = xla_tuple %s6, %s7, %s8
  %s10 = sld [smem:[#allocation0]]
  $region97: #{tpu_custom_call.1} parent=0
    _
  %s12 = ssub.s32 1, %s10
  %s13 = scalar_select 0, %s12, %s10
  $region1: #{tpu_custom_call.1} parent=0
    #allocation2 [shape = 'u8[8192]{0}', space=vmem, size = 0x2000, scoped, tag = 'input window, operand 0']
    #allocation3 [shape = 's32[2]{0}', space=sflag, size = 0x8, scoped, tag = 'scoped memory for tpu_custom_call.1']
    #allocation4 [shape = 's32[2]{0}', space=sflag, size = 0x8, scoped, tag = 'scoped memory for tpu_custom_call.1']
    #allocation5 [shape = 'u8[16384]{0}', space=vmem, size = 0x4000, scoped, tag = 'input window, operand 1']
    #allocation6 [shape = 's32[2]{0}', space=sflag, size = 0x8, scoped, tag = 'scoped memory for tpu_custom_call.1']
    #allocation7 [shape = 'u8[16384]{0}', space=vmem, size = 0x4000, scoped, tag = 'input window, operand 2, single buffered']
    #allocation8 [shape = 'u8[512]{0}', space=vmem, size = 0x400, scoped, tag = 'input window, operand 3, single buffered']
    #allocation9 [shape = 's32[1]{0}', space=sflag, size = 0x4, scoped, tag = 'scoped memory for tpu_custom_call.1']
    #allocation10 [shape = 'u8[65536]{0}', space=vmem, size = 0x10000, scoped, tag = 'input window, operand 4, single buffered']
    #allocation11 [shape = 'u8[1024]{0}', space=vmem, size = 0x400, scoped, tag = 'input window, operand 5, single buffered']
    #allocation12 [shape = 's32[1]{0}', space=sflag, size = 0x4, scoped, tag = 'scoped memory for tpu_custom_call.1']
    #allocation13 [shape = 'u8[16384]{0}', space=vmem, size = 0x4000, scoped, tag = 'output window, operand 0']
    #allocation14 [shape = 'u8[4096]{0}', space=vmem, size = 0x1000, scoped, tag = 'output window, operand 1']
    #allocation15 [shape = 's32[2]{0}', space=sflag, size = 0x8, scoped, tag = 'scoped memory for tpu_custom_call.1']
    #allocation16 [shape = 'u8[2048]{0}', space=vmem, size = 0x800, scoped, tag = 'output window, operand 2']
    %14 = vsyncpa [#allocation3], 0
    %s15 = scalar_lea.sflag [#allocation3], 1
    %16 = vsyncpa %s15, 0
    %17 = vsyncpa [#allocation6], 0
    %s18 = scalar_lea.sflag [#allocation6], 1
    %19 = vsyncpa %s18, 0
    %20 = vsyncpa [#allocation9], 0
    %21 = vsyncpa [#allocation12], 0
    %22 = vsyncpa [#allocation4], 0
    %s23 = scalar_lea.sflag [#allocation4], 1
    %24 = vsyncpa %s23, 0
    %25 = vsyncpa [#allocation15], 0
    %s26 = scalar_lea.sflag [#allocation15], 1
    %27 = vsyncpa %s26, 0
    loop: start=0, step=1, limit=4
    $region2: #{tpu_custom_call.1} parent=1 // loop_pre_header
      _
    $region3: #{tpu_custom_call.1} parent=1 // loop_header
      %s29 = sphi 0, %s33
      %p30 = scmp.ge.s32.totalorder %s29, 4
      %s39 = sphi 0, %s41
      %s42 = sphi 0, %s39
      %s43 = sphi 0, %s42
      %s59 = sphi 0, %s43
      %s65 = sphi 0, %s67
      %s68 = sphi 0, %s65
      %s69 = sphi 0, %s68
      %s85 = sphi 0, %s69
      %s89 = sphi 0, %s89
      %s91 = sphi 0, %s89
      %s92 = sphi 0, %s91
      %s106 = sphi 0, %s92
      %s110 = sphi 0, %s110
      %s112 = sphi 0, %s110
      %s113 = sphi 0, %s112
      %s127 = sphi 0, %s113
      %s131 = sphi 0, %s131
      %s133 = sphi 0, %s131
      %s134 = sphi 0, %s133
      %s148 = sphi 0, %s134
      %s152 = sphi 0, %s152
      %s154 = sphi 0, %s152
      %s155 = sphi 0, %s154
      %s169 = sphi 0, %s155
      %s175 = sphi 0, %s177
      %s178 = sphi 0, %s175
      %s179 = sphi 0, %s178
      %s195 = sphi 0, %s179
      %s201 = sphi 0, %s203
      %s204 = sphi 0, %s201
      %s205 = sphi 0, %s204
      %s221 = sphi 0, %s205
      %s227 = sphi 0, %s229
      %s230 = sphi 0, %s227
      %s231 = sphi 0, %s230
      %s247 = sphi 0, %s231
    $region4: #{tpu_custom_call.1} parent=1 // loop_header_branch
      %32 = sbr.rel (%p30) target = $region8
    $region5: #{tpu_custom_call.1} parent=1 // loop_body
      %s34 = ssub.s32 %s29, 1
      %s35 = ssub.s32 %s29, 2
      %s36 = sadd.s32 %s29, 1
      %s37 = ssub.s32 %s29, %s36
      %p38 = scmp.eq.s32.totalorder %s37, 0
      %s40 = sadd.s32 %s39, 1
      %s41 = scalar_select %p38, %s39, %s40
      %p44 = pneg %p38
      %p45 = scmp.eq.s32.totalorder %s29, 1
      %p46 = por %p44, %p45
      %p47 = scmp.ne.s32.totalorder %s39, %s42
      %p48 = scmp.eq.s32.totalorder %s29, 0
      %p49 = por %p47, %p48
      %p50 = scmp.ne.s32.totalorder %s39, %s42
      %p51 = scmp.eq.s32.totalorder %s34, 1
      %p52 = por %p50, %p51
      %p53 = scmp.ne.s32.totalorder %s42, %s43
      %p54 = scmp.eq.s32.totalorder %s34, 0
      %p55 = por %p53, %p54
      %p56 = scmp.ne.s32.totalorder %s42, %s43
      %p57 = scmp.eq.s32.totalorder %s35, 1
      %p58 = por %p56, %p57
      %p60 = scmp.ne.s32.totalorder %s43, %s59
      %p61 = scmp.eq.s32.totalorder %s35, 0
      %p62 = por %p60, %p61
      %s63 = ssub.s32 %s29, %s36
      %p64 = scmp.eq.s32.totalorder %s63, 0
      %s66 = sadd.s32 %s65, 1
      %s67 = scalar_select %p64, %s65, %s66
      %p70 = pneg %p64
      %p71 = scmp.eq.s32.totalorder %s29, 1
      %p72 = por %p70, %p71
      %p73 = scmp.ne.s32.totalorder %s65, %s68
      %p74 = scmp.eq.s32.totalorder %s29, 0
      %p75 = por %p73, %p74
      %p76 = scmp.ne.s32.totalorder %s65, %s68
      %p77 = scmp.eq.s32.totalorder %s34, 1
      %p78 = por %p76, %p77
      %p79 = scmp.ne.s32.totalorder %s68, %s69
      %p80 = scmp.eq.s32.totalorder %s34, 0
      %p81 = por %p79, %p80
      %p82 = scmp.ne.s32.totalorder %s68, %s69
      %p83 = scmp.eq.s32.totalorder %s35, 1
      %p84 = por %p82, %p83
      %p86 = scmp.ne.s32.totalorder %s69, %s85
      %p87 = scmp.eq.s32.totalorder %s35, 0
      %p88 = por %p86, %p87
      %s90 = sadd.s32 %s89, 1
      %p93 = scmp.eq.s32.totalorder %s29, 1
      %p94 = scmp.ne.s32.totalorder %s89, %s91
      %p95 = scmp.eq.s32.totalorder %s29, 0
      %p96 = por %p94, %p95
      %p97 = scmp.ne.s32.totalorder %s89, %s91
      %p98 = scmp.eq.s32.totalorder %s34, 1
      %p99 = por %p97, %p98
      %p100 = scmp.ne.s32.totalorder %s91, %s92
      %p101 = scmp.eq.s32.totalorder %s34, 0
      %p102 = por %p100, %p101
      %p103 = scmp.ne.s32.totalorder %s91, %s92
      %p104 = scmp.eq.s32.totalorder %s35, 1
      %p105 = por %p103, %p104
      %p107 = scmp.ne.s32.totalorder %s92, %s106
      %p108 = scmp.eq.s32.totalorder %s35, 0
      %p109 = por %p107, %p108
      %s111 = sadd.s32 %s110, 1
      %p114 = scmp.eq.s32.totalorder %s29, 1
      %p115 = scmp.ne.s32.totalorder %s110, %s112
      %p116 = scmp.eq.s32.totalorder %s29, 0
      %p117 = por %p115, %p116
      %p118 = scmp.ne.s32.totalorder %s110, %s112
      %p119 = scmp.eq.s32.totalorder %s34, 1
      %p120 = por %p118, %p119
      %p121 = scmp.ne.s32.totalorder %s112, %s113
      %p122 = scmp.eq.s32.totalorder %s34, 0
      %p123 = por %p121, %p122
      %p124 = scmp.ne.s32.totalorder %s112, %s113
      %p125 = scmp.eq.s32.totalorder %s35, 1
      %p126 = por %p124, %p125
      %p128 = scmp.ne.s32.totalorder %s113, %s127
      %p129 = scmp.eq.s32.totalorder %s35, 0
      %p130 = por %p128, %p129
      %s132 = sadd.s32 %s131, 1
      %p135 = scmp.eq.s32.totalorder %s29, 1
      %p136 = scmp.ne.s32.totalorder %s131, %s133
      %p137 = scmp.eq.s32.totalorder %s29, 0
      %p138 = por %p136, %p137
      %p139 = scmp.ne.s32.totalorder %s131, %s133
      %p140 = scmp.eq.s32.totalorder %s34, 1
      %p141 = por %p139, %p140
      %p142 = scmp.ne.s32.totalorder %s133, %s134
      %p143 = scmp.eq.s32.totalorder %s34, 0
      %p144 = por %p142, %p143
      %p145 = scmp.ne.s32.totalorder %s133, %s134
      %p146 = scmp.eq.s32.totalorder %s35, 1
      %p147 = por %p145, %p146
      %p149 = scmp.ne.s32.totalorder %s134, %s148
      %p150 = scmp.eq.s32.totalorder %s35, 0
      %p151 = por %p149, %p150
      %s153 = sadd.s32 %s152, 1
      %p156 = scmp.eq.s32.totalorder %s29, 1
      %p157 = scmp.ne.s32.totalorder %s152, %s154
      %p158 = scmp.eq.s32.totalorder %s29, 0
      %p159 = por %p157, %p158
      %p160 = scmp.ne.s32.totalorder %s152, %s154
      %p161 = scmp.eq.s32.totalorder %s34, 1
      %p162 = por %p160, %p161
      %p163 = scmp.ne.s32.totalorder %s154, %s155
      %p164 = scmp.eq.s32.totalorder %s34, 0
      %p165 = por %p163, %p164
      %p166 = scmp.ne.s32.totalorder %s154, %s155
      %p167 = scmp.eq.s32.totalorder %s35, 1
      %p168 = por %p166, %p167
      %p170 = scmp.ne.s32.totalorder %s155, %s169
      %p171 = scmp.eq.s32.totalorder %s35, 0
      %p172 = por %p170, %p171
      %s173 = ssub.s32 %s29, %s36
      %p174 = scmp.eq.s32.totalorder %s173, 0
      %s176 = sadd.s32 %s175, 1
      %s177 = scalar_select %p174, %s175, %s176
      %p180 = pneg %p174
      %p181 = scmp.eq.s32.totalorder %s29, 1
      %p182 = por %p180, %p181
      %p183 = scmp.ne.s32.totalorder %s175, %s178
      %p184 = scmp.eq.s32.totalorder %s29, 0
      %p185 = por %p183, %p184
      %p186 = scmp.ne.s32.totalorder %s175, %s178
      %p187 = scmp.eq.s32.totalorder %s34, 1
      %p188 = por %p186, %p187
      %p189 = scmp.ne.s32.totalorder %s178, %s179
      %p190 = scmp.eq.s32.totalorder %s34, 0
      %p191 = por %p189, %p190
      %p192 = scmp.ne.s32.totalorder %s178, %s179
      %p193 = scmp.eq.s32.totalorder %s35, 1
      %p194 = por %p192, %p193
      %p196 = scmp.ne.s32.totalorder %s179, %s195
      %p197 = scmp.eq.s32.totalorder %s35, 0
      %p198 = por %p196, %p197
      %s199 = ssub.s32 %s29, %s36
      %p200 = scmp.eq.s32.totalorder %s199, 0
      %s202 = sadd.s32 %s201, 1
      %s203 = scalar_select %p200, %s201, %s202
      %p206 = pneg %p200
      %p207 = scmp.eq.s32.totalorder %s29, 1
      %p208 = por %p206, %p207
      %p209 = scmp.ne.s32.totalorder %s201, %s204
      %p210 = scmp.eq.s32.totalorder %s29, 0
      %p211 = por %p209, %p210
      %p212 = scmp.ne.s32.totalorder %s201, %s204
      %p213 = scmp.eq.s32.totalorder %s34, 1
      %p214 = por %p212, %p213
      %p215 = scmp.ne.s32.totalorder %s204, %s205
      %p216 = scmp.eq.s32.totalorder %s34, 0
      %p217 = por %p215, %p216
      %p218 = scmp.ne.s32.totalorder %s204, %s205
      %p219 = scmp.eq.s32.totalorder %s35, 1
      %p220 = por %p218, %p219
      %p222 = scmp.ne.s32.totalorder %s205, %s221
      %p223 = scmp.eq.s32.totalorder %s35, 0
      %p224 = por %p222, %p223
      %s225 = ssub.s32 %s29, %s36
      %p226 = scmp.eq.s32.totalorder %s225, 0
      %s228 = sadd.s32 %s227, 1
      %s229 = scalar_select %p226, %s227, %s228
      %p232 = pneg %p226
      %p233 = scmp.eq.s32.totalorder %s29, 1
      %p234 = por %p232, %p233
      %p235 = scmp.ne.s32.totalorder %s227, %s230
      %p236 = scmp.eq.s32.totalorder %s29, 0
      %p237 = por %p235, %p236
      %p238 = scmp.ne.s32.totalorder %s227, %s230
      %p239 = scmp.eq.s32.totalorder %s34, 1
      %p240 = por %p238, %p239
      %p241 = scmp.ne.s32.totalorder %s230, %s231
      %p242 = scmp.eq.s32.totalorder %s34, 0
      %p243 = por %p241, %p242
      %p244 = scmp.ne.s32.totalorder %s230, %s231
      %p245 = scmp.eq.s32.totalorder %s35, 1
      %p246 = por %p244, %p245
      %p248 = scmp.ne.s32.totalorder %s231, %s247
      %p249 = scmp.eq.s32.totalorder %s35, 0
      %p250 = por %p248, %p249
      %p251 = scmp.le.s32.totalorder 1, %s29
      %p252 = scmp.lt.s32.totalorder %s29, 3
      %p253 = pnand %p251, %p252
      %p254 = pneg %p253
      // Predicated region
      $region9: #{tpu_custom_call.1} parent=5 // pred_check
        _
      $region10: #{tpu_custom_call.1} parent=5 // pred_check_branch
        %256 = sbr.rel (%p253) target = $region12
      $region11: #{tpu_custom_call.1} parent=5 // pred_region
        %s257 = ssub.s32 %s29, 1
        // Predicated region
        $region13: #{tpu_custom_call.1} parent=11 // pred_check
          %p258 = pneg %p102
        $region14: #{tpu_custom_call.1} parent=11 // pred_check_branch
          %260 = sbr.rel (%p258) target = $region16
        $region15: #{tpu_custom_call.1} parent=11 // pred_region
          %s262 = ssub.s32 512, 512
          %263 = vsyncadd [#allocation6], %s262
          %s264 = sshll.u32 [#allocation7], 4
          %s265 = int_to_ptr.vmem [resolvable:$true] %s264
          %270 = dma.hbm_to_vmem [thread:$0]  %s2, 512, %s265, [#allocation6], 128, 128, 8
        $region16: #{tpu_custom_call.1} parent=11 // pred_fallthru
          _
        // Predicated region
        $region17: #{tpu_custom_call.1} parent=11 // pred_check
          %p271 = pneg %p123
        $region18: #{tpu_custom_call.1} parent=11 // pred_check_branch
          %273 = sbr.rel (%p271) target = $region20
        $region19: #{tpu_custom_call.1} parent=11 // pred_region
          %s275 = ssub.s32 16, 16
          %276 = vsyncadd [#allocation9], %s275
          %s278 = sshll.u32 [#allocation8], 4
          %s279 = int_to_ptr.vmem [resolvable:$true] %s278
          %281 = dma.hbm_to_vmem [thread:$0]  %s3, 16, %s279, [#allocation9]
        $region20: #{tpu_custom_call.1} parent=11 // pred_fallthru
          _
        // Predicated region
        $region21: #{tpu_custom_call.1} parent=11 // pred_check
          %p282 = pneg %p144
        $region22: #{tpu_custom_call.1} parent=11 // pred_check_branch
          %284 = sbr.rel (%p282) target = $region24
        $region23: #{tpu_custom_call.1} parent=11 // pred_region
          %s286 = ssub.s32 2048, 2048
          %287 = vsyncadd [#allocation9], %s286
          %s288 = sshll.u32 [#allocation10], 4
          %s289 = int_to_ptr.vmem [resolvable:$true] %s288
          %294 = dma.hbm_to_vmem [thread:$0]  %s4, 2048, %s289, [#allocation9], 256, 256, 16
        $region24: #{tpu_custom_call.1} parent=11 // pred_fallthru
          _
        // Predicated region
        $region25: #{tpu_custom_call.1} parent=11 // pred_check
          %p295 = pneg %p165
        $region26: #{tpu_custom_call.1} parent=11 // pred_check_branch
          %297 = sbr.rel (%p295) target = $region28
        $region27: #{tpu_custom_call.1} parent=11 // pred_region
          %s299 = ssub.s32 32, 32
          %300 = vsyncadd [#allocation12], %s299
          %s302 = sshll.u32 [#allocation11], 4
          %s303 = int_to_ptr.vmem [resolvable:$true] %s302
          %305 = dma.hbm_to_vmem [thread:$0]  %s5, 32, %s303, [#allocation12]
        $region28: #{tpu_custom_call.1} parent=11 // pred_fallthru
          _
      $region12: #{tpu_custom_call.1} parent=5 // pred_fallthru
        _
      %p306 = scmp.lt.s32.totalorder %s29, 2
      // Predicated region
      $region29: #{tpu_custom_call.1} parent=5 // pred_check
        %p307 = pneg %p306
      $region30: #{tpu_custom_call.1} parent=5 // pred_check_branch
        %309 = sbr.rel (%p307) target = $region32
      $region31: #{tpu_custom_call.1} parent=5 // pred_region
        // Predicated region
        $region33: #{tpu_custom_call.1} parent=31 // pred_check
          %p310 = pneg %p49
        $region34: #{tpu_custom_call.1} parent=31 // pred_check_branch
          %312 = sbr.rel (%p310) target = $region36
        $region35: #{tpu_custom_call.1} parent=31 // pred_region
          %s313 = sand.u32 %s39, 1
          %s314 = scalar_lea.sflag [#allocation3], %s313
          %s315 = sand.u32 %s39, 1
          %s316 = smul.addr %s315, 8
          %s317 = scalar_lea.vmem [#allocation2], %s316
          %s319 = ssub.s32 128, 128
          %320 = vsyncadd %s314, %s319
          %s321 = smul.addr %s29, 128
          %s322 = scalar_lea.hbm %s0, %s321
          %s324 = sshll.u32 %s317, 4
          %s325 = int_to_ptr.vmem [resolvable:$true] %s324
          %327 = dma.hbm_to_vmem [thread:$0]  %s322, 128, %s325, %s314
        $region36: #{tpu_custom_call.1} parent=31 // pred_fallthru
          _
        // Predicated region
        $region37: #{tpu_custom_call.1} parent=31 // pred_check
          %p328 = pneg %p75
        $region38: #{tpu_custom_call.1} parent=31 // pred_check_branch
          %330 = sbr.rel (%p328) target = $region40
        $region39: #{tpu_custom_call.1} parent=31 // pred_region
          %s331 = sand.u32 %s29, 1
          %s332 = scalar_lea.sflag [#allocation6], %s331
          %s333 = sand.u32 %s65, 1
          %s334 = smul.addr %s333, 16
          %s335 = scalar_lea.vmem [#allocation5], %s334
          %s336 = smul.u32 2, %s29
          %s338 = ssub.s32 256, 256
          %339 = vsyncadd %s332, %s338
          %s340 = smul.addr %s336, 128
          %s341 = scalar_lea.hbm %s1, %s340
          %s342 = sshll.u32 %s335, 4
          %s343 = int_to_ptr.vmem [resolvable:$true] %s342
          %348 = dma.hbm_to_vmem [thread:$0]  %s341, 256, %s343, %s332, 128, 128, 8
        $region40: #{tpu_custom_call.1} parent=31 // pred_fallthru
          _
      $region32: #{tpu_custom_call.1} parent=5 // pred_fallthru
        _
      %p349 = scmp.le.s32.totalorder 1, %s29
      %p350 = scmp.lt.s32.totalorder %s29, 3
      %p351 = pnand %p349, %p350
      %p352 = pneg %p351
      // Predicated region
      $region41: #{tpu_custom_call.1} parent=5 // pred_check
        _
      $region42: #{tpu_custom_call.1} parent=5 // pred_check_branch
        %354 = sbr.rel (%p351) target = $region44
      $region43: #{tpu_custom_call.1} parent=5 // pred_region
        %s355 = ssub.s32 %s29, 1
        %s356 = sand.u32 %s42, 1
        %s357 = scalar_lea.sflag [#allocation3], %s356
        %s358 = sand.u32 %s42, 1
        %s359 = smul.addr %s358, 8
        %s360 = scalar_lea.vmem [#allocation2], %s359
        // Predicated region
        $region45: #{tpu_custom_call.1} parent=43 // pred_check
          %p361 = pneg %p55
        $region46: #{tpu_custom_call.1} parent=43 // pred_check_branch
          %363 = sbr.rel (%p361) target = $region48
        $region47: #{tpu_custom_call.1} parent=43 // pred_region
          %364 = dma.done %s357, 128
        $region48: #{tpu_custom_call.1} parent=43 // pred_fallthru
          _
        %s365 = sand.u32 %s34, 1
        %s366 = scalar_lea.sflag [#allocation6], %s365
        %s367 = sand.u32 %s68, 1
        %s368 = smul.addr %s367, 16
        %s369 = scalar_lea.vmem [#allocation5], %s368
        // Predicated region
        $region49: #{tpu_custom_call.1} parent=43 // pred_check
          %p370 = pneg %p81
        $region50: #{tpu_custom_call.1} parent=43 // pred_check_branch
          %372 = sbr.rel (%p370) target = $region52
        $region51: #{tpu_custom_call.1} parent=43 // pred_region
          %373 = dma.done %s366, 256
        $region52: #{tpu_custom_call.1} parent=43 // pred_fallthru
          _
        // Predicated region
        $region53: #{tpu_custom_call.1} parent=43 // pred_check
          %p374 = pneg %p102
        $region54: #{tpu_custom_call.1} parent=43 // pred_check_branch
          %376 = sbr.rel (%p374) target = $region56
        $region55: #{tpu_custom_call.1} parent=43 // pred_region
          %377 = dma.done [#allocation6], 512
        $region56: #{tpu_custom_call.1} parent=43 // pred_fallthru
          _
        // Predicated region
        $region57: #{tpu_custom_call.1} parent=43 // pred_check
          %p378 = pneg %p123
        $region58: #{tpu_custom_call.1} parent=43 // pred_check_branch
          %380 = sbr.rel (%p378) target = $region60
        $region59: #{tpu_custom_call.1} parent=43 // pred_region
          %381 = dma.done [#allocation9], 16
        $region60: #{tpu_custom_call.1} parent=43 // pred_fallthru
          _
        // Predicated region
        $region61: #{tpu_custom_call.1} parent=43 // pred_check
          %p382 = pneg %p144
        $region62: #{tpu_custom_call.1} parent=43 // pred_check_branch
          %384 = sbr.rel (%p382) target = $region64
        $region63: #{tpu_custom_call.1} parent=43 // pred_region
          %385 = dma.done [#allocation9], 2048
        $region64: #{tpu_custom_call.1} parent=43 // pred_fallthru
          _
        // Predicated region
        $region65: #{tpu_custom_call.1} parent=43 // pred_check
          %p386 = pneg %p165
        $region66: #{tpu_custom_call.1} parent=43 // pred_check_branch
          %388 = sbr.rel (%p386) target = $region68
        $region67: #{tpu_custom_call.1} parent=43 // pred_region
          %389 = dma.done [#allocation12], 32
        $region68: #{tpu_custom_call.1} parent=43 // pred_fallthru
          _
        %s390 = sand.u32 %s42, 1
        %s391 = scalar_lea.sflag [#allocation3], %s390
        %s392 = sand.u32 %s42, 1
        %s393 = smul.addr %s392, 8
        %s394 = scalar_lea.vmem [#allocation2], %s393
        %p395 = pneg %p55
        %p396 = pneg %p52
        %s397 = sand.u32 %s34, 1
        %s398 = scalar_lea.sflag [#allocation6], %s397
        %s399 = sand.u32 %s68, 1
        %s400 = smul.addr %s399, 16
        %s401 = scalar_lea.vmem [#allocation5], %s400
        %p402 = pneg %p81
        %p403 = pneg %p78
        %p404 = pneg %p102
        %p405 = pneg %p99
        %p406 = pneg %p123
        %p407 = pneg %p120
        %p408 = pneg %p144
        %p409 = pneg %p141
        %p410 = pneg %p165
        %p411 = pneg %p162
        %p412 = pneg %p191
        %p413 = pneg %p188
        %s414 = sand.u32 %s178, 1
        %s415 = scalar_lea.sflag [#allocation4], %s414
        %s416 = sand.u32 %s178, 1
        %s417 = smul.addr %s416, 16
        %s418 = scalar_lea.vmem [#allocation13], %s417
        %p419 = pneg %p217
        %p420 = pneg %p214
        %s421 = sand.u32 %s34, 1
        %s422 = scalar_lea.sflag [#allocation15], %s421
        %s423 = sand.u32 %s204, 1
        %s424 = smul.addr %s423, 4
        %s425 = scalar_lea.vmem [#allocation14], %s424
        %p426 = pneg %p243
        %p427 = pneg %p240
        %s428 = sand.u32 %s34, 1
        %s429 = scalar_lea.sflag [#allocation15], %s428
        %s430 = sand.u32 %s230, 1
        %s431 = smul.addr %s430, 2
        %s432 = scalar_lea.vmem [#allocation16], %s431
        %s433 = smul.u32 2, %s34
        %v434 = vld [vmem:[%s360] sm:$0xff]
        %v435 = vld [vmem:[#allocation7] sm:$0xff]
        %v436 = vld [vmem:[#allocation7 + $0x8] sm:$0xff]
        %v437 = vld [vmem:[#allocation7 + $0x10] sm:$0xff]
        %v438 = vld [vmem:[#allocation7 + $0x18] sm:$0xff]
        %v439 = vld [vmem:[#allocation8] sm:$0x1]
        %v441 = vlaneseq
        %v442 = vshrl.u32 %v441, 7
        %v443 = vsub.s32 0, %v442
        %v444 = vrot.slane %v439, %v443
        %vm446 = vcmask 261120
        %v448 = vsel %vm446, %v434, 0
        %450 = vmatprep.subr.mxu0 0.0
        %451 = vmatpush1.msra.mxu0 %v435
        %452 = vmatprep.subr.mxu0 0.0
        %453 = vmatpush1.msra.mxu0 %v436
        %454 = vmatprep.subr.mxu0 0.0
        %455 = vmatpush1.msra.mxu0 %v437
        %456 = vmatprep.subr.mxu0 0.0
        %457 = vmatpush1.msra.mxu0 %v438
        %458 = vmatprep.subr.mxu0 0.0
        %459 = vmatpush1.msra.mxu0 0.0
        %460 = vmatprep.subr.mxu0 0.0
        %461 = vmatpush1.msra.mxu0 0.0
        %462 = vmatprep.subr.mxu0 0.0
        %463 = vmatpush1.msra.mxu0 0.0
        %464 = vmatprep.subr.mxu0 0.0
        %465 = vmatpush1.msra.mxu0 0.0
        %466 = vmatprep.subr.mxu0 0.0
        %467 = vmatpush1.msra.mxu0 0.0
        %468 = vmatprep.subr.mxu0 0.0
        %469 = vmatpush1.msra.mxu0 0.0
        %470 = vmatprep.subr.mxu0 0.0
        %471 = vmatpush1.msra.mxu0 0.0
        %472 = vmatprep.subr.mxu0 0.0
        %473 = vmatpush1.msra.mxu0 0.0
        %474 = vmatprep.subr.mxu0 0.0
        %475 = vmatpush1.msra.mxu0 0.0
        %476 = vmatprep.subr.mxu0 0.0
        %477 = vmatpush1.msra.mxu0 0.0
        %478 = vmatprep.subr.mxu0 0.0
        %479 = vmatpush1.msra.mxu0 0.0
        %480 = vmatprep.subr.mxu0 0.0
        %481 = vmatpush1.msra.mxu0 0.0
        %482 = vmatprep.subr.mxu0 0.0
        %483 = vmatpush1.msra.mxu0 0.0
        %484 = vmatprep.subr.mxu0 0.0
        %485 = vmatpush1.msra.mxu0 0.0
        %486 = vmatprep.subr.mxu0 0.0
        %487 = vmatpush1.msra.mxu0 0.0
        %488 = vmatprep.subr.mxu0 0.0
        %489 = vmatpush1.msra.mxu0 0.0
        %490 = vmatprep.subr.mxu0 0.0
        %491 = vmatpush1.msra.mxu0 0.0
        %492 = vmatprep.subr.mxu0 0.0
        %493 = vmatpush1.msra.mxu0 0.0
        %494 = vmatprep.subr.mxu0 0.0
        %495 = vmatpush1.msra.mxu0 0.0
        %496 = vmatprep.subr.mxu0 0.0
        %497 = vmatpush1.msra.mxu0 0.0
        %498 = vmatprep.subr.mxu0 0.0
        %499 = vmatpush1.msra.mxu0 0.0
        %500 = vmatprep.subr.mxu0 0.0
        %501 = vmatpush1.msra.mxu0 0.0
        %502 = vmatprep.subr.mxu0 0.0
        %503 = vmatpush1.msra.mxu0 0.0
        %504 = vmatprep.subr.mxu0 0.0
        %505 = vmatpush1.msra.mxu0 0.0
        %506 = vmatprep.subr.mxu0 0.0
        %507 = vmatpush1.msra.mxu0 0.0
        %508 = vmatprep.subr.mxu0 0.0
        %509 = vmatpush1.msra.mxu0 0.0
        %510 = vmatprep.subr.mxu0 0.0
        %511 = vmatpush1.msra.mxu0 0.0
        %512 = vmatprep.subr.mxu0 0.0
        %513 = vmatpush1.msra.mxu0 0.0
        %514 = vmatprep.mubr.f32.mxu0 0.0
        %515 = vmatmul.mubr.f32.gmra.mrb[0].mxu0 %v448
        %v516 = vpop.f32.mrb[0].mxu0
        %v517 = vadd.f32 %v444, %v516
        %v518 = vpop.f32.mrb[0].mxu0
        %519 = vdwg.mxu0
        %v520 = vxor.u32 %v517, 2147483648
        %v521 = vmul.f32 %v520, 1.442695
        %v522 = vpow.pop %v521
        %v523 = vadd.f32 %v522, 1.0
        %v524 = vrcp.pop %v523
        %v525 = vmul.f32 1.0, %v524
        %v526 = vld [vmem:[#allocation10] sm:$0xff]
        %v527 = vld [vmem:[#allocation10 + $0x8] sm:$0xff]
        %v528 = vld [vmem:[#allocation10 + $0x10] sm:$0xff]
        %v529 = vld [vmem:[#allocation10 + $0x18] sm:$0xff]
        %v530 = vld [vmem:[#allocation10 + $0x20] sm:$0xff]
        %v531 = vld [vmem:[#allocation10 + $0x28] sm:$0xff]
        %v532 = vld [vmem:[#allocation10 + $0x30] sm:$0xff]
        %v533 = vld [vmem:[#allocation10 + $0x38] sm:$0xff]
        %v534 = vld [vmem:[#allocation10 + $0x40] sm:$0xff]
        %v535 = vld [vmem:[#allocation10 + $0x48] sm:$0xff]
        %v536 = vld [vmem:[#allocation10 + $0x50] sm:$0xff]
        %v537 = vld [vmem:[#allocation10 + $0x58] sm:$0xff]
        %v538 = vld [vmem:[#allocation10 + $0x60] sm:$0xff]
        %v539 = vld [vmem:[#allocation10 + $0x68] sm:$0xff]
        %v540 = vld [vmem:[#allocation10 + $0x70] sm:$0xff]
        %v541 = vld [vmem:[#allocation10 + $0x78] sm:$0xff]
        %v542 = vld [vmem:[#allocation11] sm:$0x3]
        %v544 = vlaneseq
        %v545 = vshrl.u32 %v544, 7
        %v546 = vsub.s32 0, %v545
        %v547 = vrot.slane %v542, %v546
        %v548 = vlaneseq
        %v549 = vshrl.u32 %v548, 7
        %v550 = vsub.s32 1, %v549
        %v551 = vrot.slane %v542, %v550
        %vm554 = vcmask 523264
        %v556 = vsel %vm554, %v525, 0
        %558 = vmatprep.subr.mxu0 %v527
        %559 = vmatpush1.msra.mxu0 %v526
        %560 = vmatprep.subr.mxu0 %v529
        %561 = vmatpush1.msra.mxu0 %v528
        %562 = vmatprep.subr.mxu0 %v531
        %563 = vmatpush1.msra.mxu0 %v530
        %564 = vmatprep.subr.mxu0 %v533
        %565 = vmatpush1.msra.mxu0 %v532
        %566 = vmatprep.subr.mxu0 %v535
        %567 = vmatpush1.msra.mxu0 %v534
        %568 = vmatprep.subr.mxu0 %v537
        %569 = vmatpush1.msra.mxu0 %v536
        %570 = vmatprep.subr.mxu0 %v539
        %571 = vmatpush1.msra.mxu0 %v538
        %572 = vmatprep.subr.mxu0 %v541
        %573 = vmatpush1.msra.mxu0 %v540
        %574 = vmatprep.subr.mxu0 0.0
        %575 = vmatpush1.msra.mxu0 0.0
        %576 = vmatprep.subr.mxu0 0.0
        %577 = vmatpush1.msra.mxu0 0.0
        %578 = vmatprep.subr.mxu0 0.0
        %579 = vmatpush1.msra.mxu0 0.0
        %580 = vmatprep.subr.mxu0 0.0
        %581 = vmatpush1.msra.mxu0 0.0
        %582 = vmatprep.subr.mxu0 0.0
        %583 = vmatpush1.msra.mxu0 0.0
        %584 = vmatprep.subr.mxu0 0.0
        %585 = vmatpush1.msra.mxu0 0.0
        %586 = vmatprep.subr.mxu0 0.0
        %587 = vmatpush1.msra.mxu0 0.0
        %588 = vmatprep.subr.mxu0 0.0
        %589 = vmatpush1.msra.mxu0 0.0
        %590 = vmatprep.subr.mxu0 0.0
        %591 = vmatpush1.msra.mxu0 0.0
        %592 = vmatprep.subr.mxu0 0.0
        %593 = vmatpush1.msra.mxu0 0.0
        %594 = vmatprep.subr.mxu0 0.0
        %595 = vmatpush1.msra.mxu0 0.0
        %596 = vmatprep.subr.mxu0 0.0
        %597 = vmatpush1.msra.mxu0 0.0
        %598 = vmatprep.subr.mxu0 0.0
        %599 = vmatpush1.msra.mxu0 0.0
        %600 = vmatprep.subr.mxu0 0.0
        %601 = vmatpush1.msra.mxu0 0.0
        %602 = vmatprep.subr.mxu0 0.0
        %603 = vmatpush1.msra.mxu0 0.0
        %604 = vmatprep.subr.mxu0 0.0
        %605 = vmatpush1.msra.mxu0 0.0
        %606 = vmatprep.subr.mxu0 0.0
        %607 = vmatpush1.msra.mxu0 0.0
        %608 = vmatprep.subr.mxu0 0.0
        %609 = vmatpush1.msra.mxu0 0.0
        %610 = vmatprep.subr.mxu0 0.0
        %611 = vmatpush1.msra.mxu0 0.0
        %612 = vmatprep.subr.mxu0 0.0
        %613 = vmatpush1.msra.mxu0 0.0
        %614 = vmatprep.subr.mxu0 0.0
        %615 = vmatpush1.msra.mxu0 0.0
        %616 = vmatprep.subr.mxu0 0.0
        %617 = vmatpush1.msra.mxu0 0.0
        %618 = vmatprep.subr.mxu0 0.0
        %619 = vmatpush1.msra.mxu0 0.0
        %620 = vmatprep.subr.mxu0 0.0
        %621 = vmatpush1.msra.mxu0 0.0
        %622 = vmatprep.mubr.f32.mxu0 0.0
        %623 = vmatmul.mubr.f32.gmra.mrb[0].mxu0 %v556
        %v624 = vpop.f32.mrb[0].mxu0
        %v625 = vadd.f32 %v547, %v624
        %v626 = vpop.f32.mrb[0].mxu0
        %v627 = vadd.f32 %v551, %v626
        %628 = vdwg.mxu0
        %629 = vst [vmem:[%s418] sm:$0xff] %v625
        %630 = vst [vmem:[%s418 + $0x8] sm:$0xff] %v627
        %v631 = vrot.slane %v625, 4
        %v632 = vadd.f32 %v625, %v631
        %v633 = vrot.slane %v632, 2
        %v634 = vadd.f32 %v632, %v633
        %v635 = vrot.slane %v634, 1
        %v636 = vadd.f32 %v634, %v635
        %v637 = vrot.slane %v627, 4
        %v638 = vadd.f32 %v627, %v637
        %v639 = vrot.slane %v638, 2
        %v640 = vadd.f32 %v638, %v639
        %v641 = vrot.slane %v640, 1
        %v642 = vadd.f32 %v640, %v641
        %v645 = vcombine.low %v636, %v642
        %v647 = vunpack.c.l.s4 1966171168
        %v648 = vunpack.c.0.s8 %v647
        %v649 = vlaneseq
        %v650 = vshrl.u32 %v649, 7
        %v651 = vsub.s32 %v648, %v650
        %v652 = vrot.slane %v645, %v651
        %v654 = vunpack.c.l.s4 1966171168
        %v655 = vunpack.c.0.s8 %v654
        %v656 = vlaneseq
        %v657 = vshrl.u32 %v656, 7
        %v658 = vsub.s32 %v655, %v657
        %v659 = vrot.slane %v652, %v658
        %v661 = vlaneseq
        %vm662 = vcmp.ge.s32.totalorder %v661, 0
        %vm663 = vcmp.lt.s32.totalorder %v661, 256
        %vm664 = vmand %vm662, %vm663
        %665 = vst.msk [vmem:[%s425] ss:$2 sm:$0x3] %vm664, %v659
        %v666 = vmul.f32 %v625, %v625
        %v667 = vmul.f32 %v627, %v627
        %v668 = vrot.slane %v666, 4
        %v669 = vadd.f32 %v666, %v668
        %v670 = vrot.slane %v669, 2
        %v671 = vadd.f32 %v669, %v670
        %v672 = vrot.slane %v671, 1
        %v673 = vadd.f32 %v671, %v672
        %v674 = vrot.slane %v667, 4
        %v675 = vadd.f32 %v667, %v674
        %v676 = vrot.slane %v675, 2
        %v677 = vadd.f32 %v675, %v676
        %v678 = vrot.slane %v677, 1
        %v679 = vadd.f32 %v677, %v678
        %v682 = vcombine.low %v673, %v679
        %v684 = vunpack.c.l.s4 1966171168
        %v685 = vunpack.c.0.s8 %v684
        %v686 = vlaneseq
        %v687 = vshrl.u32 %v686, 7
        %v688 = vsub.s32 %v685, %v687
        %v689 = vrot.slane %v682, %v688
        %v691 = vunpack.c.l.s4 1966171168
        %v692 = vunpack.c.0.s8 %v691
        %v693 = vlaneseq
        %v694 = vshrl.u32 %v693, 7
        %v695 = vsub.s32 %v692, %v694
        %v696 = vrot.slane %v689, %v695
        %s698 = scalar_lea.vmem %s425, 1 [#allocation14]
        %699 = vst.msk [vmem:[%s698] ss:$2 sm:$0x3] %vm664, %v696
        %v700 = vld [vmem:[%s369] sm:$0xff]
        %v701 = vld [vmem:[%s369 + $0x8] sm:$0xff]
        %v702 = vadd.f32 %v700, %v701
        %v703 = vrot.slane %v702, 4
        %v704 = vadd.f32 %v702, %v703
        %v705 = vrot.slane %v704, 2
        %v706 = vadd.f32 %v704, %v705
        %v707 = vrot.slane %v706, 1
        %v708 = vadd.f32 %v706, %v707
        %709 = vst [vmem:[%s432] sm:$0x1] %v708
        %v710 = vmul.f32 %v700, %v700
        %v711 = vmul.f32 %v701, %v701
        %v712 = vadd.f32 %v710, %v711
        %v713 = vrot.slane %v712, 4
        %v714 = vadd.f32 %v712, %v713
        %v715 = vrot.slane %v714, 2
        %v716 = vadd.f32 %v714, %v715
        %v717 = vrot.slane %v716, 1
        %v718 = vadd.f32 %v716, %v717
        %719 = vst [vmem:[%s432 + $0x1] sm:$0x1] %v718
        %s720 = sand.u32 %s178, 1
        %s721 = scalar_lea.sflag [#allocation4], %s720
        %s722 = sand.u32 %s178, 1
        %s723 = smul.addr %s722, 16
        %s724 = scalar_lea.vmem [#allocation13], %s723
        %s725 = sand.u32 %s34, 1
        %s726 = scalar_lea.sflag [#allocation15], %s725
        %s727 = sand.u32 %s204, 1
        %s728 = smul.addr %s727, 4
        %s729 = scalar_lea.vmem [#allocation14], %s728
        %s730 = sand.u32 %s34, 1
        %s731 = scalar_lea.sflag [#allocation15], %s730
        %s732 = sand.u32 %s230, 1
        %s733 = smul.addr %s732, 2
        %s734 = scalar_lea.vmem [#allocation16], %s733
        // Predicated region
        $region69: #{tpu_custom_call.1} parent=43 // pred_check
          %p735 = pneg %p188
        $region70: #{tpu_custom_call.1} parent=43 // pred_check_branch
          %737 = sbr.rel (%p735) target = $region72
        $region71: #{tpu_custom_call.1} parent=43 // pred_region
          %s739 = ssub.s32 256, 256
          %740 = vsyncadd %s721, %s739
          %s741 = smul.addr %s34, 2
          %s742 = smul.addr %s741, 128
          %s743 = scalar_lea.hbm %s6, %s742
          %s745 = sshll.u32 %s724, 4
          %s746 = int_to_ptr.vmem [resolvable:$true] %s745
          %748 = dma.vmem_to_hbm [thread:$0]  %s746, 256, %s743, %s721
        $region72: #{tpu_custom_call.1} parent=43 // pred_fallthru
          _
        // Predicated region
        $region73: #{tpu_custom_call.1} parent=43 // pred_check
          %p749 = pneg %p214
        $region74: #{tpu_custom_call.1} parent=43 // pred_check_branch
          %751 = sbr.rel (%p749) target = $region76
        $region75: #{tpu_custom_call.1} parent=43 // pred_region
          %s753 = ssub.s32 64, 64
          %754 = vsyncadd %s726, %s753
          %s755 = smul.addr %s34, 2
          %s756 = smul.addr %s755, 32
          %s757 = scalar_lea.hbm %s7, %s756
          %s759 = sshll.u32 %s729, 4
          %s760 = int_to_ptr.vmem [resolvable:$true] %s759
          %762 = dma.vmem_to_hbm [thread:$0]  %s760, 64, %s757, %s726
        $region76: #{tpu_custom_call.1} parent=43 // pred_fallthru
          _
        // Predicated region
        $region77: #{tpu_custom_call.1} parent=43 // pred_check
          %p763 = pneg %p240
        $region78: #{tpu_custom_call.1} parent=43 // pred_check_branch
          %765 = sbr.rel (%p763) target = $region80
        $region79: #{tpu_custom_call.1} parent=43 // pred_region
          %s767 = ssub.s32 32, 32
          %768 = vsyncadd %s731, %s767
          %s769 = smul.addr %s34, 32
          %s770 = scalar_lea.hbm %s8, %s769
          %s772 = sshll.u32 %s734, 4
          %s773 = int_to_ptr.vmem [resolvable:$true] %s772
          %775 = dma.vmem_to_hbm [thread:$0]  %s773, 32, %s770, %s731
        $region80: #{tpu_custom_call.1} parent=43 // pred_fallthru
          _
      $region44: #{tpu_custom_call.1} parent=5 // pred_fallthru
        _
      %p776 = scmp.le.s32.totalorder 2, %s29
      // Predicated region
      $region81: #{tpu_custom_call.1} parent=5 // pred_check
        %p777 = pneg %p776
      $region82: #{tpu_custom_call.1} parent=5 // pred_check_branch
        %779 = sbr.rel (%p777) target = $region84
      $region83: #{tpu_custom_call.1} parent=5 // pred_region
        %s780 = ssub.s32 %s29, 2
        // Predicated region
        $region85: #{tpu_custom_call.1} parent=83 // pred_check
          %p781 = pneg %p194
        $region86: #{tpu_custom_call.1} parent=83 // pred_check_branch
          %783 = sbr.rel (%p781) target = $region88
        $region87: #{tpu_custom_call.1} parent=83 // pred_region
          %s784 = sand.u32 %s179, 1
          %s785 = scalar_lea.sflag [#allocation4], %s784
          %s786 = sand.u32 %s179, 1
          %s787 = smul.addr %s786, 16
          %s788 = scalar_lea.vmem [#allocation13], %s787
          %789 = dma.done %s785, 256
        $region88: #{tpu_custom_call.1} parent=83 // pred_fallthru
          _
        // Predicated region
        $region89: #{tpu_custom_call.1} parent=83 // pred_check
          %p790 = pneg %p220
        $region90: #{tpu_custom_call.1} parent=83 // pred_check_branch
          %792 = sbr.rel (%p790) target = $region92
        $region91: #{tpu_custom_call.1} parent=83 // pred_region
          %s793 = sand.u32 %s35, 1
          %s794 = scalar_lea.sflag [#allocation15], %s793
          %s795 = sand.u32 %s205, 1
          %s796 = smul.addr %s795, 4
          %s797 = scalar_lea.vmem [#allocation14], %s796
          %798 = dma.done %s794, 64
        $region92: #{tpu_custom_call.1} parent=83 // pred_fallthru
          _
        // Predicated region
        $region93: #{tpu_custom_call.1} parent=83 // pred_check
          %p799 = pneg %p246
        $region94: #{tpu_custom_call.1} parent=83 // pred_check_branch
          %801 = sbr.rel (%p799) target = $region96
        $region95: #{tpu_custom_call.1} parent=83 // pred_region
          %s802 = sand.u32 %s35, 1
          %s803 = scalar_lea.sflag [#allocation15], %s802
          %s804 = sand.u32 %s231, 1
          %s805 = smul.addr %s804, 2
          %s806 = scalar_lea.vmem [#allocation16], %s805
          %807 = dma.done %s803, 32
        $region96: #{tpu_custom_call.1} parent=83 // pred_fallthru
          _
      $region84: #{tpu_custom_call.1} parent=5 // pred_fallthru
        _
    $region6: #{tpu_custom_call.1} parent=1 // loop_footer
      %s33 = sadd.s32 1, %s29
    $region7: #{tpu_custom_call.1} parent=1 // loop_footer_branch
      %28 = sbr.rel target = $region3
    $region8: #{tpu_custom_call.1} parent=1 // loop_exit
      _
    %808 = vsyncpa [#allocation3], 1
    %s809 = scalar_lea.sflag [#allocation3], 1
    %810 = vsyncpa %s809, 1
    %811 = vsyncpa [#allocation6], 1
    %s812 = scalar_lea.sflag [#allocation6], 1
    %813 = vsyncpa %s812, 1
    %814 = vsyncpa [#allocation9], 1
    %815 = vsyncpa [#allocation12], 1
    %816 = vsyncpa [#allocation4], 1
    %s817 = scalar_lea.sflag [#allocation4], 1
    %818 = vsyncpa %s817, 1
    %819 = vsyncpa [#allocation15], 1
    %s820 = scalar_lea.sflag [#allocation15], 1
    %821 = vsyncpa %s820, 1

</llo_original>
